<compile_context>
chip_gen: v5e
topology: v5e:2x2
jax: 0.10.0
libtpu: 0.0.40
codegen_flags: <defaults>
</compile_context>

<pallas_src>
import jax
import jax.numpy as jnp
from jax.experimental import pallas as pl
from jax.experimental.pallas import tpu as pltpu


_MATMUL_MAX_COARSE = 1024   # above this, switch to the DMA row-gather path


def _round_up(x, m):
    return (x + m - 1) // m * m


def _pick_row_tile(n_rows, tmax):
    """Prefer a multiple-of-8 divisor of n_rows (no row padding -> no output
    re-slice); otherwise the largest multiple-of-8 tile <= tmax."""
    d = (min(tmax, n_rows) // 8) * 8
    while d >= 64:
        if n_rows % d == 0:
            return d
        d -= 8
    if 0 < n_rows <= tmax and n_rows % 8 == 0:
        return n_rows
    return max(8, min(tmax, _round_up(max(n_rows, 1), 8)))


def _vmem_capacity():
    try:
        return int(pltpu.get_tpu_info().vmem_capacity_bytes)
    except Exception:   # interpret mode / older runtimes
        return 64 << 20


def _vmem_limit(requested_bytes):
    """Generation-aware scoped-VMEM limit (v5e/v6e: 128 MiB, v7x: 64 MiB)."""
    cap = _vmem_capacity()
    hi = max(16 << 20, cap - (16 << 20))
    return int(min(max(int(requested_bytes), 16 << 20), hi))


# ----------------------------------------------------------------------------
# Path A (small N_coarse): one-hot @ x_coarse on the MXU, x resident in VMEM
# ----------------------------------------------------------------------------
def _onehot_gather_kernel(ids_ref, x_ref, o_ref):
    # ids_ref : (tm, 1)      int32 cluster id per fine node
    #                        (id == N_coarse points at an all-zero row)
    # x_ref   : (nc_ext, tf) coarse features, VMEM-resident across the inner
    #                        (row-tile) grid axis
    # o_ref   : (tm, tf)
    ids = ids_ref[...]                                    # (tm, 1) int32
    tm = ids.shape[0]
    k = x_ref.shape[0]
    onehot = (ids == jax.lax.broadcasted_iota(jnp.int32, (tm, k), 1)
              ).astype(x_ref.dtype)                       # exact 0/1 weights
    o_ref[...] = jnp.dot(onehot, x_ref[...],
                         preferred_element_type=jnp.float32).astype(o_ref.dtype)


def _unpool_gather_matmul(ids, x_eff):
    N_fine = int(ids.shape[0])
    N_coarse, F = int(x_eff.shape[0]), int(x_eff.shape[1])
    dt = x_eff.dtype
    xb = dt.itemsize

    nc_ext = _round_up(N_coarse + 1, 8)      # +1 guarantees an all-zero row
    f_pad = _round_up(F, 128)                # lane-dense output blocks
    tm = _pick_row_tile(N_fine, 512)         # keep the MXU M dimension wide
    nf_pad = _round_up(N_fine, tm)

    # Feature tile: largest candidate dividing f_pad whose double-buffered
    # x block + output block fits a conservative VMEM budget (matters on v7x).
    budget = _vmem_capacity() // 2
    tf = 128
    for cand in (512, 256, 128):
        if f_pad % cand == 0 and 2 * cand * (nc_ext + tm) * xb <= budget:
            tf = cand
            break

    ids_p = jnp.full((nf_pad, 1), N_coarse, dtype=jnp.int32)
    ids_p = ids_p.at[:N_fine, 0].set(ids.astype(jnp.int32))
    x_p = jnp.zeros((nc_ext, f_pad), dtype=dt)
    x_p = x_p.at[:N_coarse, :F].set(x_eff)

    # Feature axis OUTER, row axis INNER: the x block index (0, j) does not
    # change across the inner loop, so Pallas skips its re-DMA.
    grid = (f_pad // tf, nf_pad // tm)

    vmem_bytes = (2 * (tm * 4 + nc_ext * tf * xb + tm * tf * xb)
                  + tm * nc_ext * 4 + tm * tf * 4 + (2 << 20))

    out = pl.pallas_call(
        _onehot_gather_kernel,
        out_shape=jax.ShapeDtypeStruct((nf_pad, f_pad), dt),
        grid_spec=pltpu.PrefetchScalarGridSpec(
            num_scalar_prefetch=0,
            grid=grid,
            in_specs=[
                pl.BlockSpec((tm, 1), lambda j, i: (i, 0)),        # cluster ids
                pl.BlockSpec((nc_ext, tf), lambda j, i: (0, j)),   # coarse feats
            ],
            out_specs=pl.BlockSpec((tm, tf), lambda j, i: (i, j)),
        ),
        compiler_params=pltpu.CompilerParams(
            dimension_semantics=("parallel", "parallel"),
            vmem_limit_bytes=_vmem_limit(vmem_bytes)),
    )(ids_p, x_p)

    if nf_pad != N_fine or f_pad != F:
        out = out[:N_fine, :F]
    return out


# ----------------------------------------------------------------------------
# Path B (large N_coarse): true DMA row gather, x_coarse stays in HBM
# ----------------------------------------------------------------------------
def _dma_gather_kernel(ids_ref, x_hbm, o_ref, row_sem):
    # ids_ref : (nf_pad,) int32, scalar-prefetched into SMEM
    # x_hbm   : (nc_ext, fk)    coarse features, left in HBM (pl.ANY)
    # o_ref   : (tm, tf)        output block in VMEM
    # row_sem : DMA semaphore shared by all per-row copies of this tile
    j = pl.program_id(0)          # feature tile (outer)
    i = pl.program_id(1)          # fine-row tile (inner)
    tm, tf = o_ref.shape
    base = i * tm
    col0 = pl.multiple_of(j * tf, tf)

    # Issue one row copy per fine node, straight into the output VMEM block
    # (Pallas overlaps the previous block's HBM writeback with these copies).
    @pl.loop(0, tm)
    def _issue(r):
        rid = ids_ref[base + r]
        pltpu.make_async_copy(
            x_hbm.at[pl.ds(rid, 1), pl.ds(col0, tf)],
            o_ref.at[pl.ds(r, 1), :],
            row_sem,
        ).start()

    # Drain: every copy has the same byte count, so waiting tm times on the
    # shared semaphore with a same-shaped descriptor is exact.
    @pl.loop(0, tm)
    def _drain(r):
        pltpu.make_async_copy(
            x_hbm.at[pl.ds(0, 1), pl.ds(col0, tf)],
            o_ref.at[pl.ds(0, 1), :],
            row_sem,
        ).wait()


def _unpool_gather_dma(ids, x_eff):
    N_fine = int(ids.shape[0])
    N_coarse, F = int(x_eff.shape[0]), int(x_eff.shape[1])
    dt = x_eff.dtype
    xb = dt.itemsize
    ratio = max(1, 4 // xb)                  # elements per 32-bit word

    nc_ext = _round_up(N_coarse + 1, 8)      # +1 guarantees an all-zero row
    f_pad = _round_up(F, 128 * ratio)        # packed width stays lane-dense

    x_p = jnp.zeros((nc_ext, f_pad), dtype=dt)
    x_p = x_p.at[:N_coarse, :F].set(x_eff)
    if ratio > 1:
        # Pack sub-32-bit rows into uint32 words so single-row DMA scatters
        # into the VMEM output block stay sublane-aligned.
        x_k = jax.lax.bitcast_convert_type(
            x_p.reshape(nc_ext, f_pad // ratio, ratio), jnp.uint32)
        kdt = jnp.dtype(jnp.uint32)
    else:
        x_k, kdt = x_p, jnp.dtype(dt)
    fk = f_pad // ratio                      # kernel feature width (32-bit units)

    tm = _pick_row_tile(N_fine, 256)
    nf_pad = _round_up(N_fine, tm)
    tf = 128
    for cand in (1024, 512, 256, 128):
        if fk % cand == 0:
            tf = cand
            break

    # TODO(synk): for N_fine >~ 200K the scalar-prefetched id table outgrows
    # SMEM; stage per-tile id blocks HBM->SMEM with a second manual DMA instead.
    ids_p = jnp.full((nf_pad,), N_coarse, dtype=jnp.int32)
    ids_p = ids_p.at[:N_fine].set(ids.astype(jnp.int32))

    grid = (fk // tf, nf_pad // tm)          # feature outer, rows inner

    out = pl.pallas_call(
        _dma_gather_kernel,
        out_shape=jax.ShapeDtypeStruct((nf_pad, fk), kdt),
        grid_spec=pltpu.PrefetchScalarGridSpec(
            num_scalar_prefetch=1,                          # ids -> SMEM
            grid=grid,
            in_specs=[pl.BlockSpec(memory_space=pl.ANY)],   # x stays in HBM
            out_specs=pl.BlockSpec((tm, tf), lambda j, i, ids: (i, j)),
            scratch_shapes=[pltpu.SemaphoreType.DMA(())],
        ),
        compiler_params=pltpu.CompilerParams(
            dimension_semantics=("parallel", "parallel"),
            vmem_limit_bytes=_vmem_limit(2 * tm * tf * 4 + (4 << 20))),
    )(ids_p, x_k)

    if ratio > 1:
        out = jax.lax.bitcast_convert_type(out, dt).reshape(nf_pad, f_pad)
    if nf_pad != N_fine or f_pad != F:
        out = out[:N_fine, :F]
    return out


def _unpool_gather(ids, x_eff, force_path=None):
    """x_fine[i] = x_eff[ids[i]]; ids == N_coarse selects an all-zero row."""
    N_coarse = int(x_eff.shape[0])
    if force_path == "matmul":
        use_matmul = True
    elif force_path == "dma":
        use_matmul = False
    else:
        use_matmul = (N_coarse + 1) <= _MATMUL_MAX_COARSE
    if use_matmul:
        return _unpool_gather_matmul(ids, x_eff)
    return _unpool_gather_dma(ids, x_eff)


# ----------------------------------------------------------------------------
# Glue: method-dependent derivation of ids / effective coarse features (XLA)
# ----------------------------------------------------------------------------
def cmg_unpool_features(x_coarse, P, method="copy", cluster_assignments=None,
                        degree=None, rng_key=None):
    if isinstance(P, (list, tuple)):
        P = P[0]
    P = jnp.asarray(P)
    x_coarse = jnp.asarray(x_coarse)
    N_fine, N_coarse = P.shape

    # Hard-assignment assumption (CMG coarsening produces one-hot rows).  ids
    # are derived in one streaming XLA pass over P; P never enters the kernels.
    # NOTE: a soft/weighted P would silently degrade to an argmax gather here.
    cluster_of = jnp.argmax(P, axis=1).astype(jnp.int32)        # [N_fine]
    row_in_cluster = P.max(axis=1) > 0                          # [N_fine]
    ZERO_ROW = jnp.int32(N_coarse)                              # appended zero row

    if method == "copy":
        ids = jnp.where(row_in_cluster, cluster_of, ZERO_ROW)
        x_eff = x_coarse
    elif method == "mean":
        sizes = jnp.maximum(jnp.sum(P.astype(jnp.float32), axis=0), 1.0)
        inv = (1.0 / sizes).astype(x_coarse.dtype)
        x_eff = x_coarse * inv[:, None]                         # fold the scale in
        ids = jnp.where(row_in_cluster, cluster_of, ZERO_ROW)
    elif method in ("first", "random", "central"):
        if method == "first":
            sel = jnp.argmax(P, axis=0)                          # first fine node
        elif method == "central":
            # With degree=None all members tie and argmax picks the first
            # member (same as 'first').
            if degree is None:
                degree = jnp.zeros((N_fine,), dtype=jnp.float32)
            score = jnp.where(P > 0, degree[:, None], -jnp.inf)
            sel = jnp.argmax(score, axis=0)
        else:  # random
            key = rng_key if rng_key is not None else jax.random.PRNGKey(0)
            noise = jax.random.uniform(key, P.shape)
            score = jnp.where(P > 0, noise, -jnp.inf)
            sel = jnp.argmax(score, axis=0)
        # A fine node keeps its cluster's feature only if its own cluster
        # selected it; empty clusters have no members so their (bogus) sel
        # entries are never consulted.
        selected = row_in_cluster & (jnp.arange(N_fine) == sel[cluster_of])
        ids = jnp.where(selected, cluster_of, ZERO_ROW)
        x_eff = x_coarse
    else:
        raise ValueError(f"unknown method {method!r}")

    return _unpool_gather(ids, x_eff)


class CMGUnpooling:
    """JAX/Pallas port of graphzoom CMGUnpooling."""

    def __init__(self, method="copy"):
        self.method = method

    def __call__(self, x_coarse, P, cluster_assignments=None, degree=None,
                 rng_key=None):
        if isinstance(P, (list, tuple)):
            P = P[0]
        return cmg_unpool_features(x_coarse, P, method=self.method,
                                   cluster_assignments=cluster_assignments,
                                   degree=degree, rng_key=rng_key)


# ----------------------------------------------------------------------------
# Demo / self-check
# ----------------------------------------------------------------------------
if __name__ == "__main__":
    key = jax.random.PRNGKey(0)
    k_assign, k_feat, k_deg, k_rand = jax.random.split(key, 4)

    N_FINE, N_COARSE, F = 64, 8, 32

    # deterministic cluster assignment (each fine node -> one coarse node)
    clusters = jax.random.randint(k_assign, (N_FINE,), 0, N_COARSE)
    clusters = clusters.at[:N_COARSE].set(jnp.arange(N_COARSE))  # no empty cluster
    P = jax.nn.one_hot(clusters, N_COARSE, dtype=jnp.float32)    # [N_fine, N_coarse]

    x_coarse = jax.random.normal(k_feat, (N_COARSE, F), dtype=jnp.float32)
    degree = jax.random.uniform(k_deg, (N_FINE,), dtype=jnp.float32)

    # --- 'copy' (matmul-gather path) ------------------------------------------
    out_copy = CMGUnpooling("copy")(x_coarse, [P])
    jax.block_until_ready(out_copy)
    ref_copy = P @ x_coarse
    assert jnp.allclose(out_copy, ref_copy, atol=1e-5), "copy mismatch"

    # --- 'mean' ----------------------------------------------------------------
    out_mean = CMGUnpooling("mean")(x_coarse, P)
    jax.block_until_ready(out_mean)
    sizes = jnp.maximum(P.sum(0), 1.0)
    ref_mean = (P / sizes[None, :]) @ x_coarse
    assert jnp.allclose(out_mean, ref_mean, atol=1e-5), "mean mismatch"

    # --- 'first' ---------------------------------------------------------------
    out_first = CMGUnpooling("first")(x_coarse, P)
    jax.block_until_ready(out_first)
    sel_f = jnp.argmax(P, axis=0)
    ref_first = jnp.zeros((N_FINE, F), jnp.float32).at[sel_f].set(x_coarse)
    assert jnp.allclose(out_first, ref_first, atol=1e-5), "first mismatch"

    # --- 'central' -------------------------------------------------------------
    out_central = CMGUnpooling("central")(x_coarse, P, degree=degree)
    jax.block_until_ready(out_central)
    score_c = jnp.where(P > 0, degree[:, None], -jnp.inf)
    sel_c = jnp.argmax(score_c, axis=0)
    ref_central = jnp.zeros((N_FINE, F), jnp.float32).at[sel_c].set(x_coarse)
    assert jnp.allclose(out_central, ref_central, atol=1e-5), "central mismatch"

    # --- 'random': exactly one member per cluster gets its cluster's feature ----
    out_random = CMGUnpooling("random")(x_coarse, P, rng_key=k_rand)
    jax.block_until_ready(out_random)
    sel_mask = jnp.any(out_random != 0.0, axis=1)
    assert int(sel_mask.sum()) == N_COARSE, "random: wrong number of selected nodes"
    ref_rows = x_coarse[clusters]
    diff = jnp.where(sel_mask[:, None], out_random - ref_rows, 0.0)
    assert jnp.allclose(diff, 0.0, atol=1e-5), "random: selected row has wrong feature"
    assert jnp.allclose(out_random.sum(0), x_coarse.sum(0), atol=1e-4), \
        "random: per-cluster multiplicity is off"

    # --- forced DMA row-gather path (the large-N_coarse code path), f32 --------
    ids_copy = clusters.astype(jnp.int32)
    out_dma = _unpool_gather(ids_copy, x_coarse, force_path="dma")
    jax.block_until_ready(out_dma)
    assert jnp.array_equal(out_dma, x_coarse[clusters]), "dma path mismatch"

    # --- forced DMA path with a 16-bit dtype (packed-uint32 row copies) ---------
    x_bf16 = x_coarse.astype(jnp.bfloat16)
    out_dma16 = _unpool_gather(ids_copy, x_bf16, force_path="dma")
    jax.block_until_ready(out_dma16)
    assert jnp.array_equal(out_dma16, x_bf16[clusters]), "dma bf16 mismatch"

    print("KERNEL_OK")
</pallas_src>

<mosaic_0001>
module attributes {stable_mosaic.version = 11 : i64} {
  func.func @_onehot_gather_kernel(%arg0: i32, %arg1: i32, %arg2: memref<64x1xi32, #tpu.memory_space<vmem>>, %arg3: memref<16x128xf32, #tpu.memory_space<vmem>>, %arg4: memref<64x128xf32, #tpu.memory_space<vmem>>) attributes {dimension_semantics = [#tpu.dimension_semantics<parallel>, #tpu.dimension_semantics<parallel>], iteration_bounds = array<i64: 1, 1>, scalar_prefetch = 0 : i64, scratch_operands = 0 : i64, tpu.core_type = #tpu.core_type<tc>, window_params = [{transform_indices = @transform_0, window_bounds = array<i64: 64, 1>}, {transform_indices = @transform_1, window_bounds = array<i64: 16, 128>}, {transform_indices = @transform_2, window_bounds = array<i64: 64, 128>}]} {
    %c0 = arith.constant 0 : index
    %c0_0 = arith.constant 0 : index
    %0 = vector.load %arg2[%c0, %c0_0] : memref<64x1xi32, #tpu.memory_space<vmem>>, vector<64x1xi32>
    %1 = tpu.iota {dimensions = array<i32: 1>} : vector<64x16xi32>
    %2 = vector.broadcast %0 : vector<64x1xi32> to vector<64x16xi32>
    %3 = arith.cmpi eq, %2, %1 : vector<64x16xi32>
    %4 = arith.extui %3 : vector<64x16xi1> to vector<64x16xi32>
    %5 = arith.sitofp %4 : vector<64x16xi32> to vector<64x16xf32>
    %c0_1 = arith.constant 0 : index
    %c0_2 = arith.constant 0 : index
    %6 = vector.load %arg3[%c0_1, %c0_2] : memref<16x128xf32, #tpu.memory_space<vmem>>, vector<16x128xf32>
    %cst = arith.constant dense<0.000000e+00> : vector<64x128xf32>
    %7 = tpu.matmul %5, %6, %cst {dimension_numbers = #tpu.dot_dimension_numbers<[1], [0], [0], [1], [0, 0, 1, 1], [], []>} : vector<64x16xf32>, vector<16x128xf32>, vector<64x128xf32> -> vector<64x128xf32>
    %c0_3 = arith.constant 0 : index
    %c0_4 = arith.constant 0 : index
    %8 = vector.load %arg4[%c0_3, %c0_4] : memref<64x128xf32, #tpu.memory_space<vmem>>, vector<64x128xf32>
    tpu.vector_store %arg4[%c0_3, %c0_4], %7 {strides = array<i32>} : memref<64x128xf32, #tpu.memory_space<vmem>>, vector<64x128xf32>,
    return
  }
  func.func @transform_0(%arg0: i32, %arg1: i32) -> (i32, i32) {
    %c0_i32 = arith.constant 0 : i32
    %c0_i32_0 = arith.constant 0 : i32
    return %arg1, %c0_i32 : i32, i32
  }
  func.func @transform_1(%arg0: i32, %arg1: i32) -> (i32, i32) {
    %c0_i32 = arith.constant 0 : i32
    %c0_i32_0 = arith.constant 0 : i32
    return %c0_i32, %arg0 : i32, i32
  }
  func.func @transform_2(%arg0: i32, %arg1: i32) -> (i32, i32) {
    %c0_i32 = arith.constant 0 : i32
    return %arg1, %arg0 : i32, i32
  }
}

</mosaic_0001>

<llo_original>
// kernel: tpu_custom_call.1
$region0: #{tpu_custom_call.1}
  #allocation0 [shape = 'u32[]', space=smem, size = 0x4, offset = 0x4, fixed_abs, tag = 'smem constant byte address 0x4 - core index']
  #allocation1 [shape = 'u32[72,128]{1,0:T(1,128)}', space=vmem, size = 0x9000, scoped, tag = 'internal scratch']
  %s0 = inlined_call_operand.vmem [shape: s32[64,1], index: 0, kind: input, shape index: {}]
  %s1 = inlined_call_operand.vmem [shape: f32[16,128], index: 1, kind: input, shape index: {}]
  %s2 = inlined_call_operand.hbm [shape: f32[64,128], index: 2, kind: output, shape index: {}]
  %s3 = sld [smem:[#allocation0]]
  $region18: #{tpu_custom_call.1} parent=0
    _
  %s5 = ssub.s32 1, %s3
  %s6 = scalar_select 0, %s5, %s3
  $region1: #{tpu_custom_call.1} parent=0
    #allocation2 [shape = 'u8[32768]{0}', space=vmem, size = 0x8000, scoped, tag = 'output window, operand 0, single buffered']
    #allocation3 [shape = 's32[1]{0}', space=sflag, size = 0x4, scoped, tag = 'scoped memory for tpu_custom_call.1']
    %7 = vsyncpa [#allocation3], 0
    // Predicated region
    $region2: #{tpu_custom_call.1} parent=1 // pred_check
      _
    $region3: #{tpu_custom_call.1} parent=1 // pred_check_branch
      %9 = sbr.rel (0) target = $region5
    $region4: #{tpu_custom_call.1} parent=1 // pred_region
      _
    $region5: #{tpu_custom_call.1} parent=1 // pred_fallthru
      _
    // Predicated region
    $region6: #{tpu_custom_call.1} parent=1 // pred_check
      _
    $region7: #{tpu_custom_call.1} parent=1 // pred_check_branch
      %11 = sbr.rel (0) target = $region9
    $region8: #{tpu_custom_call.1} parent=1 // pred_region
      _
    $region9: #{tpu_custom_call.1} parent=1 // pred_fallthru
      _
    %v12 = vld [vmem:[%s0] sm:$0xff]
    %v13 = vld [vmem:[%s0 + $0x8] sm:$0xff]
    %v14 = vld [vmem:[%s0 + $0x10] sm:$0xff]
    %v15 = vld [vmem:[%s0 + $0x18] sm:$0xff]
    %v16 = vld [vmem:[%s0 + $0x20] sm:$0xff]
    %v17 = vld [vmem:[%s0 + $0x28] sm:$0xff]
    %v18 = vld [vmem:[%s0 + $0x30] sm:$0xff]
    %v19 = vld [vmem:[%s0 + $0x38] sm:$0xff]
    %v20 = vlaneseq
    %v21 = vand.u32 %v20, 127
    %22 = vset.pattern.permute.xlu0 0
    %23 = vperm.xlu0 %22, %v12
    %v24 = vpop.permute.xlu0 %23
    %25 = vset.pattern.permute.xlu0 0
    %26 = vperm.xlu0 %25, %v13
    %v27 = vpop.permute.xlu0 %26
    %28 = vset.pattern.permute.xlu0 0
    %29 = vperm.xlu0 %28, %v14
    %v30 = vpop.permute.xlu0 %29
    %31 = vset.pattern.permute.xlu0 0
    %32 = vperm.xlu0 %31, %v15
    %v33 = vpop.permute.xlu0 %32
    %34 = vset.pattern.permute.xlu0 0
    %35 = vperm.xlu0 %34, %v16
    %v36 = vpop.permute.xlu0 %35
    %37 = vset.pattern.permute.xlu0 0
    %38 = vperm.xlu0 %37, %v17
    %v39 = vpop.permute.xlu0 %38
    %40 = vset.pattern.permute.xlu0 0
    %41 = vperm.xlu0 %40, %v18
    %v42 = vpop.permute.xlu0 %41
    %43 = vset.pattern.permute.xlu0 0
    %44 = vperm.xlu0 %43, %v19
    %v45 = vpop.permute.xlu0 %44
    %vm46 = vcmp.eq.s32.totalorder %v24, %v21
    %vm47 = vcmp.eq.s32.totalorder %v27, %v21
    %vm48 = vcmp.eq.s32.totalorder %v30, %v21
    %vm49 = vcmp.eq.s32.totalorder %v33, %v21
    %vm50 = vcmp.eq.s32.totalorder %v36, %v21
    %vm51 = vcmp.eq.s32.totalorder %v39, %v21
    %vm52 = vcmp.eq.s32.totalorder %v42, %v21
    %vm53 = vcmp.eq.s32.totalorder %v45, %v21
    %v54 = vsel %vm46, 1, 0
    %v55 = vsel %vm47, 1, 0
    %v56 = vsel %vm48, 1, 0
    %v57 = vsel %vm49, 1, 0
    %v58 = vsel %vm50, 1, 0
    %v59 = vsel %vm51, 1, 0
    %v60 = vsel %vm52, 1, 0
    %v61 = vsel %vm53, 1, 0
    %v62 = vcvt.s32.f32 %v54
    %v63 = vcvt.s32.f32 %v55
    %v64 = vcvt.s32.f32 %v56
    %v65 = vcvt.s32.f32 %v57
    %v66 = vcvt.s32.f32 %v58
    %v67 = vcvt.s32.f32 %v59
    %v68 = vcvt.s32.f32 %v60
    %v69 = vcvt.s32.f32 %v61
    %v70 = vld [vmem:[%s1] sm:$0xff]
    %v71 = vld [vmem:[%s1 + $0x8] sm:$0xff]
    %vm72 = vcmask 130048
    %v74 = vsel %vm72, %v62, 0
    %v77 = vsel %vm72, %v63, 0
    %v80 = vsel %vm72, %v64, 0
    %v83 = vsel %vm72, %v65, 0
    %v86 = vsel %vm72, %v66, 0
    %v89 = vsel %vm72, %v67, 0
    %v92 = vsel %vm72, %v68, 0
    %v95 = vsel %vm72, %v69, 0
    %97 = vmatpush.msra.mxu0 0.0
    %98 = vmatpush.msra.mxu0 0.0
    %99 = vmatpush.msra.mxu0 0.0
    %100 = vmatpush.msra.mxu0 0.0
    %101 = vmatpush.msra.mxu0 0.0
    %102 = vmatpush.msra.mxu0 0.0
    %103 = vmatpush.msra.mxu0 0.0
    %104 = vmatpush.msra.mxu0 0.0
    %105 = vmatpush.msra.mxu0 0.0
    %106 = vmatpush.msra.mxu0 0.0
    %107 = vmatpush.msra.mxu0 0.0
    %108 = vmatpush.msra.mxu0 0.0
    %109 = vmatpush.msra.mxu0 0.0
    %110 = vmatpush.msra.mxu0 0.0
    %111 = vmatpush.msra.mxu0 %v71
    %112 = vmatpush.msra.mxu0 %v70
    %113 = vmatmul.f32.gmra.mxu0 %v74
    %v114 = vpop.f32.mrf.mxu0
    %v115 = vadd.f32 0.0, %v114
    %116 = vmatmul.f32.gmra.mxu0 %v77
    %v117 = vpop.f32.mrf.mxu0
    %v118 = vadd.f32 0.0, %v117
    %119 = vmatmul.f32.gmra.mxu0 %v80
    %v120 = vpop.f32.mrf.mxu0
    %v121 = vadd.f32 0.0, %v120
    %122 = vmatmul.f32.gmra.mxu0 %v83
    %v123 = vpop.f32.mrf.mxu0
    %v124 = vadd.f32 0.0, %v123
    %125 = vmatmul.f32.gmra.mxu0 %v86
    %v126 = vpop.f32.mrf.mxu0
    %v127 = vadd.f32 0.0, %v126
    %128 = vmatmul.f32.gmra.mxu0 %v89
    %v129 = vpop.f32.mrf.mxu0
    %v130 = vadd.f32 0.0, %v129
    %131 = vmatmul.f32.gmra.mxu0 %v92
    %v132 = vpop.f32.mrf.mxu0
    %v133 = vadd.f32 0.0, %v132
    %134 = vmatmul.f32.gmra.mxu0 %v95
    %v135 = vpop.f32.mrf.mxu0
    %v136 = vadd.f32 0.0, %v135
    %137 = vdwg.mxu0
    %138 = vst [vmem:[#allocation2] sm:$0xff] %v115
    %139 = vst [vmem:[#allocation2 + $0x8] sm:$0xff] %v118
    %140 = vst [vmem:[#allocation2 + $0x10] sm:$0xff] %v121
    %141 = vst [vmem:[#allocation2 + $0x18] sm:$0xff] %v124
    %142 = vst [vmem:[#allocation2 + $0x20] sm:$0xff] %v127
    %143 = vst [vmem:[#allocation2 + $0x28] sm:$0xff] %v130
    %144 = vst [vmem:[#allocation2 + $0x30] sm:$0xff] %v133
    %145 = vst [vmem:[#allocation2 + $0x38] sm:$0xff] %v136
    // Predicated region
    $region10: #{tpu_custom_call.1} parent=1 // pred_check
      _
    $region11: #{tpu_custom_call.1} parent=1 // pred_check_branch
      %147 = sbr.rel (0) target = $region13
    $region12: #{tpu_custom_call.1} parent=1 // pred_region
      %149 = vsyncadd [#allocation3], 0
      %s150 = sshll.u32 [#allocation2], 4
      %s151 = int_to_ptr.vmem [resolvable:$true] %s150
      %s152 = sshll.u32 %s2, 4
      %s153 = int_to_ptr.hbm [resolvable:$true] %s152
      %158 = dma.vmem_to_hbm [thread:$0]  %s151, 1024, %s153, [#allocation3], 128, 128, 8
    $region13: #{tpu_custom_call.1} parent=1 // pred_fallthru
      _
    // Predicated region
    $region14: #{tpu_custom_call.1} parent=1 // pred_check
      _
    $region15: #{tpu_custom_call.1} parent=1 // pred_check_branch
      %160 = sbr.rel (0) target = $region17
    $region16: #{tpu_custom_call.1} parent=1 // pred_region
      %162 = dma.done [#allocation3], 1024
    $region17: #{tpu_custom_call.1} parent=1 // pred_fallthru
      _
    %163 = vsyncpa [#allocation3], 1

</llo_original>
